<compile_context>
chip_gen: v7x
topology: tpu7x:2x2x1
jax: 0.10.0
libtpu: 0.0.40
codegen_flags: <defaults>
</compile_context>

<pallas_src>
import functools

import jax
import jax.numpy as jnp
from jax.experimental import pallas as pl
from jax.experimental.pallas import tpu as pltpu

EPS = 1e-5  # PyTorch nn.LayerNorm default


# ----------------------------------------------------------------------------
# in-kernel helpers
# ----------------------------------------------------------------------------
def _layernorm(x, w, b):
    # x: (..., D); w, b broadcast over rows. Biased variance (PyTorch).
    mu = jnp.mean(x, axis=-1, keepdims=True)
    var = jnp.mean((x - mu) ** 2, axis=-1, keepdims=True)
    return (x - mu) * jax.lax.rsqrt(var + EPS) * w + b


# ----------------------------------------------------------------------------
# Pallas kernels
# ----------------------------------------------------------------------------
def patch_embed_kernel(p_ref, pe_ref, ln1w, ln1b, w1, b1, ln2w, ln2b, o_ref,
                       *, mxu_dtype):
    # p_ref: (TB, N, patch_dim); pe_ref: (N, dim)
    TB, N, PD = p_ref.shape
    D = w1.shape[1]
    p = p_ref[...].reshape(TB * N, PD)
    x = _layernorm(p, ln1w[...], ln1b[...])
    x = jnp.dot(x.astype(mxu_dtype), w1[...].astype(mxu_dtype),
                preferred_element_type=jnp.float32) + b1[...]
    x = _layernorm(x, ln2w[...], ln2b[...])
    o_ref[...] = x.reshape(TB, N, D) + pe_ref[...][None]


def transformer_block_kernel(x_ref, a_lnw, a_lnb, wq_ref, wk_ref, wv_ref,
                             wo_ref, bo_ref, f_lnw, f_lnb, w1_ref, b1_ref,
                             w2_ref, b2_ref, o_ref, *, heads, dim_head,
                             mxu_dtype):
    # Fused: x + Attention(LN(x)); then y + MLP(LN(y)). x_ref: (TB, N, D).
    TB, N, D = x_ref.shape
    H, Dh = heads, dim_head
    G = TB * H                                   # batch dim for head matmuls
    x = x_ref[...]                               # (TB, N, D) f32

    # ---- attention ----
    xn = _layernorm(x.reshape(TB * N, D), a_lnw[...], a_lnb[...])
    # (TB*H, N, D): replicate normalized tokens per head (major-dim broadcast,
    # no lane/sublane relayout), so every head contraction is one batched dot.
    xb = jnp.broadcast_to(xn.reshape(TB, 1, N, D),
                          (TB, H, N, D)).reshape(G, N, D).astype(mxu_dtype)

    def bweight(w_ref):
        # (H, a, b) -> (TB*H, a, b) via leading-dim broadcast (tile replication)
        w = w_ref[...]
        return jnp.broadcast_to(
            w[None], (TB,) + w.shape).reshape((G,) + w.shape[1:]).astype(mxu_dtype)

    scale = Dh ** -0.5
    # q is scaled here (N*Dh elems) instead of scaling the (N,N) dots.
    q = jnp.einsum('gnd,gdk->gnk', xb, bweight(wq_ref),
                   preferred_element_type=jnp.float32) * scale
    k = jnp.einsum('gnd,gdk->gnk', xb, bweight(wk_ref),
                   preferred_element_type=jnp.float32)
    v = jnp.einsum('gnd,gdk->gnk', xb, bweight(wv_ref),
                   preferred_element_type=jnp.float32)

    dots = jnp.einsum('gnk,gmk->gnm', q.astype(mxu_dtype), k.astype(mxu_dtype),
                      preferred_element_type=jnp.float32)        # (G, N, N)
    dots = dots - jnp.max(dots, axis=-1, keepdims=True)
    e = jnp.exp(dots)
    attn = e * pl.reciprocal(jnp.sum(e, axis=-1, keepdims=True), approx=True)

    ctx = jnp.einsum('gnm,gmk->gnk', attn.astype(mxu_dtype), v.astype(mxu_dtype),
                     preferred_element_type=jnp.float32)          # (G, N, Dh)
    # Per-head output projection; head merge is a sum over the head axis, so
    # no concatenate / relayout is needed.
    proj = jnp.einsum('gnk,gkd->gnd', ctx.astype(mxu_dtype), bweight(wo_ref),
                      preferred_element_type=jnp.float32)         # (G, N, D)
    attn_out = proj.reshape(TB, H, N, D).sum(axis=1) + bo_ref[...][None]
    x = x + attn_out                                              # residual

    # ---- feed-forward ----
    h = _layernorm(x.reshape(TB * N, D), f_lnw[...], f_lnb[...])
    h = jnp.dot(h.astype(mxu_dtype), w1_ref[...].astype(mxu_dtype),
                preferred_element_type=jnp.float32) + b1_ref[...]
    h = jax.nn.gelu(h, approximate=False)   # exact erf GELU (nn.GELU default)
    h = jnp.dot(h.astype(mxu_dtype), w2_ref[...].astype(mxu_dtype),
                preferred_element_type=jnp.float32) + b2_ref[...]
    o_ref[...] = x + h.reshape(TB, N, D)                          # residual


def head_kernel(x_ref, lnw, lnb, w_ref, b_ref, o_ref, *, mxu_dtype):
    # x_ref: (TB, N, D) -> mean pool -> LN -> linear -> (TB, 1, C_pad)
    TB, N, D = x_ref.shape
    C = w_ref.shape[1]
    pooled = jnp.mean(x_ref[...], axis=1, keepdims=True)           # (TB, 1, D)
    pn = _layernorm(pooled, lnw[...], lnb[...])
    w_b = jnp.broadcast_to(w_ref[...][None], (TB, D, C)).astype(mxu_dtype)
    logits = jnp.einsum('bnd,bdc->bnc', pn.astype(mxu_dtype), w_b,
                        preferred_element_type=jnp.float32) + b_ref[...][None]
    o_ref[...] = logits


# ----------------------------------------------------------------------------
# pallas_call wrappers
# ----------------------------------------------------------------------------
def _full_spec(shape):
    return pl.BlockSpec(shape, lambda b: (0,) * len(shape))


def _batch_block(B, max_tb=8):
    # Prefer >= 2 grid steps (so v7x's 2 TensorCores both get work) while still
    # packing several batch rows per step to amortize per-step overhead.
    if B <= 1:
        return 1
    tb = min(max_tb, max(1, B // 2))
    while B % tb:
        tb -= 1
    return max(tb, 1)


def patch_embed(patches, pe, params, *, batch_block, mxu_dtype):
    B, N, PD = patches.shape
    D = params["w1"].shape[1]
    TB = batch_block
    kern = functools.partial(patch_embed_kernel, mxu_dtype=mxu_dtype)
    return pl.pallas_call(
        kern,
        out_shape=jax.ShapeDtypeStruct((B, N, D), jnp.float32),
        grid=(B // TB,),
        in_specs=[
            pl.BlockSpec((TB, N, PD), lambda b: (b, 0, 0)),
            _full_spec(pe.shape),
            _full_spec(params["ln1w"].shape), _full_spec(params["ln1b"].shape),
            _full_spec(params["w1"].shape), _full_spec(params["b1"].shape),
            _full_spec(params["ln2w"].shape), _full_spec(params["ln2b"].shape),
        ],
        out_specs=pl.BlockSpec((TB, N, D), lambda b: (b, 0, 0)),
        compiler_params=pltpu.CompilerParams(dimension_semantics=("parallel",)),
    )(patches, pe, params["ln1w"], params["ln1b"], params["w1"], params["b1"],
      params["ln2w"], params["ln2b"])


def transformer_block(x, attn_p, ff_p, *, heads, dim_head, batch_block,
                      mxu_dtype):
    # One pallas_call per layer: attention + MLP fused, activation stays in
    # VMEM between the two sub-blocks.
    # NOTE(v7x): for real ViT sizes (e.g. 768x3072 MLP) set
    # pltpu.CompilerParams(vmem_limit_bytes=...) and/or use bf16 weights /
    # tile the MLP over mlp_dim so resident weights fit the 64 MiB VMEM.
    B, N, D = x.shape
    TB = batch_block
    kern = functools.partial(transformer_block_kernel, heads=heads,
                             dim_head=dim_head, mxu_dtype=mxu_dtype)
    return pl.pallas_call(
        kern,
        out_shape=jax.ShapeDtypeStruct((B, N, D), jnp.float32),
        grid=(B // TB,),
        in_specs=[
            pl.BlockSpec((TB, N, D), lambda b: (b, 0, 0)),
            _full_spec(attn_p["lnw"].shape), _full_spec(attn_p["lnb"].shape),
            _full_spec(attn_p["wq_h"].shape), _full_spec(attn_p["wk_h"].shape),
            _full_spec(attn_p["wv_h"].shape), _full_spec(attn_p["wo_h"].shape),
            _full_spec(attn_p["bo"].shape),
            _full_spec(ff_p["lnw"].shape), _full_spec(ff_p["lnb"].shape),
            _full_spec(ff_p["w1"].shape), _full_spec(ff_p["b1"].shape),
            _full_spec(ff_p["w2"].shape), _full_spec(ff_p["b2"].shape),
        ],
        out_specs=pl.BlockSpec((TB, N, D), lambda b: (b, 0, 0)),
        compiler_params=pltpu.CompilerParams(dimension_semantics=("parallel",)),
    )(x, attn_p["lnw"], attn_p["lnb"], attn_p["wq_h"], attn_p["wk_h"],
      attn_p["wv_h"], attn_p["wo_h"], attn_p["bo"], ff_p["lnw"], ff_p["lnb"],
      ff_p["w1"], ff_p["b1"], ff_p["w2"], ff_p["b2"])


def linear_head(x, params, *, batch_block, mxu_dtype):
    B, N, D = x.shape
    C = params["w"].shape[1]
    C_pad = pl.cdiv(C, 128) * 128       # lane-dense output slab (full vst)
    # Layout plumbing in the wrapper: pad the tiny head weight/bias once.
    w_p = jnp.zeros((D, C_pad), jnp.float32).at[:, :C].set(params["w"])
    b_p = jnp.zeros((1, C_pad), jnp.float32).at[:, :C].set(params["b"])
    TB = batch_block
    kern = functools.partial(head_kernel, mxu_dtype=mxu_dtype)
    out = pl.pallas_call(
        kern,
        out_shape=jax.ShapeDtypeStruct((B, 1, C_pad), jnp.float32),
        grid=(B // TB,),
        in_specs=[
            pl.BlockSpec((TB, N, D), lambda b: (b, 0, 0)),
            _full_spec(params["lnw"].shape), _full_spec(params["lnb"].shape),
            _full_spec((D, C_pad)), _full_spec((1, C_pad)),
        ],
        out_specs=pl.BlockSpec((TB, 1, C_pad), lambda b: (b, 0, 0)),
        compiler_params=pltpu.CompilerParams(dimension_semantics=("parallel",)),
    )(x, params["lnw"], params["lnb"], w_p, b_p)
    return out[:, 0, :C]


# ----------------------------------------------------------------------------
# plain-JAX glue: patchify + sincos positional embedding + parameter init
# ----------------------------------------------------------------------------
def patchify(img, patch_size):
    # img: (B, C, H, W) NCHW ->  'b c (h p1) (w p2) -> b (h w) (p1 p2 c)'
    B, C, H, W = img.shape
    p1 = p2 = patch_size
    h, w = H // p1, W // p2
    x = img.reshape(B, C, h, p1, w, p2)
    x = jnp.transpose(x, (0, 2, 4, 3, 5, 1))        # (B, h, w, p1, p2, C)
    return x.reshape(B, h * w, p1 * p2 * C), h, w


def posemb_sincos_2d(h, w, dim, temperature=10000.0, dtype=jnp.float32):
    assert dim % 4 == 0, "feature dimension must be multiple of 4 for sincos emb"
    y, x = jnp.meshgrid(jnp.arange(h), jnp.arange(w), indexing="ij")
    omega = jnp.arange(dim // 4) / (dim // 4 - 1)
    omega = 1.0 / temperature ** omega
    y = y.flatten()[:, None] * omega[None, :]
    x = x.flatten()[:, None] * omega[None, :]
    pe = jnp.concatenate((jnp.sin(x), jnp.cos(x), jnp.sin(y), jnp.cos(y)), axis=1)
    return pe.astype(dtype)


def init_vit_params(key, *, num_classes, patch_dim, dim, depth, heads, dim_head,
                    mlp_dim):
    inner = heads * dim_head
    ks = jax.random.split(key, 8 + depth * 8)
    ki = iter(ks)

    def lin(k, fan_in, fan_out):
        return (jax.random.normal(k, (fan_in, fan_out), jnp.float32)
                * (fan_in ** -0.5))

    def per_head_in(w):    # (dim, heads*dh) -> (heads, dim, dh)
        return jnp.transpose(w.reshape(dim, heads, dim_head), (1, 0, 2))

    def per_head_out(w):   # (heads*dh, dim) -> (heads, dh, dim)
        return w.reshape(heads, dim_head, dim)

    params = {
        "patch": {
            "ln1w": jnp.ones((1, patch_dim), jnp.float32),
            "ln1b": jnp.zeros((1, patch_dim), jnp.float32),
            "w1": lin(next(ki), patch_dim, dim),
            "b1": jnp.zeros((1, dim), jnp.float32),
            "ln2w": jnp.ones((1, dim), jnp.float32),
            "ln2b": jnp.zeros((1, dim), jnp.float32),
        },
        "layers": [],
        "head": {
            "lnw": jnp.ones((1, dim), jnp.float32),
            "lnb": jnp.zeros((1, dim), jnp.float32),
            "w": lin(next(ki), dim, num_classes),
            "b": jnp.zeros((1, num_classes), jnp.float32),
        },
    }
    for _ in range(depth):
        attn = {
            "lnw": jnp.ones((1, dim), jnp.float32),
            "lnb": jnp.zeros((1, dim), jnp.float32),
            # weights pre-reshaped to per-head layout (done once at init)
            "wq_h": per_head_in(lin(next(ki), dim, inner)),
            "wk_h": per_head_in(lin(next(ki), dim, inner)),
            "wv_h": per_head_in(lin(next(ki), dim, inner)),
            "wo_h": per_head_out(lin(next(ki), inner, dim)),
            "bo": jnp.zeros((1, dim), jnp.float32),
        }
        ff = {
            "lnw": jnp.ones((1, dim), jnp.float32),
            "lnb": jnp.zeros((1, dim), jnp.float32),
            "w1": lin(next(ki), dim, mlp_dim),
            "b1": jnp.zeros((1, mlp_dim), jnp.float32),
            "w2": lin(next(ki), mlp_dim, dim),
            "b2": jnp.zeros((1, dim), jnp.float32),
        }
        params["layers"].append({"attn": attn, "ff": ff})
    return params


def vit_forward(img, params, *, patch_size, dim, heads, dim_head,
                mxu_dtype=jnp.float32):
    # mxu_dtype=jnp.bfloat16 is recommended on v6e/v7x (f32 accumulation is
    # kept either way); default f32 matches the PyTorch reference numerics.
    patches, h, w = patchify(img, patch_size)           # (B, N, patch_dim)
    pe = posemb_sincos_2d(h, w, dim)                    # (N, dim)
    B = patches.shape[0]
    tb = _batch_block(B)
    x = patch_embed(patches, pe, params["patch"],
                    batch_block=tb, mxu_dtype=mxu_dtype)
    for layer in params["layers"]:
        x = transformer_block(x, layer["attn"], layer["ff"], heads=heads,
                              dim_head=dim_head, batch_block=tb,
                              mxu_dtype=mxu_dtype)
    return linear_head(x, params["head"], batch_block=tb, mxu_dtype=mxu_dtype)


# ----------------------------------------------------------------------------
if __name__ == "__main__":
    # small ViT config
    batch = 2
    channels = 4
    image_size = 16
    patch_size = 4
    dim = 32
    depth = 2
    heads = 4
    dim_head = 8
    mlp_dim = 64
    num_classes = 10
    patch_dim = channels * patch_size * patch_size  # 64

    key = jax.random.PRNGKey(0)
    k_img, k_par = jax.random.split(key)
    img = jax.random.normal(k_img, (batch, channels, image_size, image_size),
                            jnp.float32)

    params = init_vit_params(
        k_par, num_classes=num_classes, patch_dim=patch_dim, dim=dim,
        depth=depth, heads=heads, dim_head=dim_head, mlp_dim=mlp_dim)

    logits = vit_forward(img, params, patch_size=patch_size, dim=dim,
                         heads=heads, dim_head=dim_head,
                         mxu_dtype=jnp.float32)
    logits = jax.block_until_ready(logits)
    assert logits.shape == (batch, num_classes)
    assert bool(jnp.all(jnp.isfinite(logits)))
    print("KERNEL_OK")
</pallas_src>

<mosaic_0001>
module attributes {stable_mosaic.version = 11 : i64} {
  func.func @patch_embed_kernel(%arg0: i32, %arg1: memref<1x16x64xf32, #tpu.memory_space<vmem>>, %arg2: memref<16x32xf32, #tpu.memory_space<vmem>>, %arg3: memref<1x64xf32, #tpu.memory_space<vmem>>, %arg4: memref<1x64xf32, #tpu.memory_space<vmem>>, %arg5: memref<64x32xf32, #tpu.memory_space<vmem>>, %arg6: memref<1x32xf32, #tpu.memory_space<vmem>>, %arg7: memref<1x32xf32, #tpu.memory_space<vmem>>, %arg8: memref<1x32xf32, #tpu.memory_space<vmem>>, %arg9: memref<1x16x32xf32, #tpu.memory_space<vmem>>) attributes {dimension_semantics = [#tpu.dimension_semantics<parallel>], iteration_bounds = array<i64: 2>, scalar_prefetch = 0 : i64, scratch_operands = 0 : i64, tpu.core_type = #tpu.core_type<tc>, window_params = [{transform_indices = @transform_0, window_bounds = array<i64: 1, 16, 64>}, {pipeline_mode = #tpu.pipeline_mode<synchronous>, transform_indices = @transform_1, window_bounds = array<i64: 16, 32>}, {pipeline_mode = #tpu.pipeline_mode<synchronous>, transform_indices = @transform_2, window_bounds = array<i64: 1, 64>}, {pipeline_mode = #tpu.pipeline_mode<synchronous>, transform_indices = @transform_3, window_bounds = array<i64: 1, 64>}, {pipeline_mode = #tpu.pipeline_mode<synchronous>, transform_indices = @transform_4, window_bounds = array<i64: 64, 32>}, {pipeline_mode = #tpu.pipeline_mode<synchronous>, transform_indices = @transform_5, window_bounds = array<i64: 1, 32>}, {pipeline_mode = #tpu.pipeline_mode<synchronous>, transform_indices = @transform_6, window_bounds = array<i64: 1, 32>}, {pipeline_mode = #tpu.pipeline_mode<synchronous>, transform_indices = @transform_7, window_bounds = array<i64: 1, 32>}, {transform_indices = @transform_8, window_bounds = array<i64: 1, 16, 32>}]} {
    %c0 = arith.constant 0 : index
    %c0_0 = arith.constant 0 : index
    %c0_1 = arith.constant 0 : index
    %0 = vector.load %arg1[%c0, %c0_0, %c0_1] : memref<1x16x64xf32, #tpu.memory_space<vmem>>, vector<1x16x64xf32>
    %1 = vector.shape_cast %0 : vector<1x16x64xf32> to vector<16x64xf32>
    %c0_2 = arith.constant 0 : index
    %c0_3 = arith.constant 0 : index
    %2 = vector.load %arg3[%c0_2, %c0_3] : memref<1x64xf32, #tpu.memory_space<vmem>>, vector<1x64xf32>
    %c0_4 = arith.constant 0 : index
    %c0_5 = arith.constant 0 : index
    %3 = vector.load %arg4[%c0_4, %c0_5] : memref<1x64xf32, #tpu.memory_space<vmem>>, vector<1x64xf32>
    %cst = arith.constant dense<0.000000e+00> : vector<16xf32>
    %4 = vector.multi_reduction <add>, %1, %cst [1] : vector<16x64xf32> to vector<16xf32>
    %5 = vector.shape_cast %4 : vector<16xf32> to vector<16x1xf32>
    %cst_6 = arith.constant 6.400000e+01 : f32
    %6 = vector.broadcast %cst_6 : f32 to vector<16x1xf32>
    %7 = arith.divf %5, %6 : vector<16x1xf32>
    %8 = vector.broadcast %7 : vector<16x1xf32> to vector<16x64xf32>
    %9 = arith.subf %1, %8 : vector<16x64xf32>
    %10 = arith.mulf %9, %9 : vector<16x64xf32>
    %cst_7 = arith.constant dense<0.000000e+00> : vector<16xf32>
    %11 = vector.multi_reduction <add>, %10, %cst_7 [1] : vector<16x64xf32> to vector<16xf32>
    %12 = vector.shape_cast %11 : vector<16xf32> to vector<16x1xf32>
    %cst_8 = arith.constant 6.400000e+01 : f32
    %13 = vector.broadcast %cst_8 : f32 to vector<16x1xf32>
    %14 = arith.divf %12, %13 : vector<16x1xf32>
    %15 = vector.broadcast %7 : vector<16x1xf32> to vector<16x64xf32>
    %16 = arith.subf %1, %15 : vector<16x64xf32>
    %cst_9 = arith.constant 9.99999974E-6 : f32
    %17 = vector.broadcast %cst_9 : f32 to vector<16x1xf32>
    %18 = arith.addf %14, %17 : vector<16x1xf32>
    %19 = math.rsqrt %18 : vector<16x1xf32>
    %20 = vector.broadcast %19 : vector<16x1xf32> to vector<16x64xf32>
    %21 = arith.mulf %16, %20 : vector<16x64xf32>
    %22 = vector.broadcast %2 : vector<1x64xf32> to vector<16x64xf32>
    %23 = arith.mulf %21, %22 : vector<16x64xf32>
    %24 = vector.broadcast %3 : vector<1x64xf32> to vector<16x64xf32>
    %25 = arith.addf %23, %24 : vector<16x64xf32>
    %c0_10 = arith.constant 0 : index
    %c0_11 = arith.constant 0 : index
    %26 = vector.load %arg5[%c0_10, %c0_11] : memref<64x32xf32, #tpu.memory_space<vmem>>, vector<64x32xf32>
    %cst_12 = arith.constant dense<0.000000e+00> : vector<16x32xf32>
    %27 = tpu.matmul %25, %26, %cst_12 {dimension_numbers = #tpu.dot_dimension_numbers<[1], [0], [0], [1], [0, 0, 1, 1], [], []>} : vector<16x64xf32>, vector<64x32xf32>, vector<16x32xf32> -> vector<16x32xf32>
    %c0_13 = arith.constant 0 : index
    %c0_14 = arith.constant 0 : index
    %28 = vector.load %arg6[%c0_13, %c0_14] : memref<1x32xf32, #tpu.memory_space<vmem>>, vector<1x32xf32>
    %29 = vector.broadcast %28 : vector<1x32xf32> to vector<16x32xf32>
    %30 = arith.addf %27, %29 : vector<16x32xf32>
    %c0_15 = arith.constant 0 : index
    %c0_16 = arith.constant 0 : index
    %31 = vector.load %arg7[%c0_15, %c0_16] : memref<1x32xf32, #tpu.memory_space<vmem>>, vector<1x32xf32>
    %c0_17 = arith.constant 0 : index
    %c0_18 = arith.constant 0 : index
    %32 = vector.load %arg8[%c0_17, %c0_18] : memref<1x32xf32, #tpu.memory_space<vmem>>, vector<1x32xf32>
    %cst_19 = arith.constant dense<0.000000e+00> : vector<16xf32>
    %33 = vector.multi_reduction <add>, %30, %cst_19 [1] : vector<16x32xf32> to vector<16xf32>
    %34 = vector.shape_cast %33 : vector<16xf32> to vector<16x1xf32>
    %cst_20 = arith.constant 3.200000e+01 : f32
    %35 = vector.broadcast %cst_20 : f32 to vector<16x1xf32>
    %36 = arith.divf %34, %35 : vector<16x1xf32>
    %37 = vector.broadcast %36 : vector<16x1xf32> to vector<16x32xf32>
    %38 = arith.subf %30, %37 : vector<16x32xf32>
    %39 = arith.mulf %38, %38 : vector<16x32xf32>
    %cst_21 = arith.constant dense<0.000000e+00> : vector<16xf32>
    %40 = vector.multi_reduction <add>, %39, %cst_21 [1] : vector<16x32xf32> to vector<16xf32>
    %41 = vector.shape_cast %40 : vector<16xf32> to vector<16x1xf32>
    %cst_22 = arith.constant 3.200000e+01 : f32
    %42 = vector.broadcast %cst_22 : f32 to vector<16x1xf32>
    %43 = arith.divf %41, %42 : vector<16x1xf32>
    %44 = vector.broadcast %36 : vector<16x1xf32> to vector<16x32xf32>
    %45 = arith.subf %30, %44 : vector<16x32xf32>
    %cst_23 = arith.constant 9.99999974E-6 : f32
    %46 = vector.broadcast %cst_23 : f32 to vector<16x1xf32>
    %47 = arith.addf %43, %46 : vector<16x1xf32>
    %48 = math.rsqrt %47 : vector<16x1xf32>
    %49 = vector.broadcast %48 : vector<16x1xf32> to vector<16x32xf32>
    %50 = arith.mulf %45, %49 : vector<16x32xf32>
    %51 = vector.broadcast %31 : vector<1x32xf32> to vector<16x32xf32>
    %52 = arith.mulf %50, %51 : vector<16x32xf32>
    %53 = vector.broadcast %32 : vector<1x32xf32> to vector<16x32xf32>
    %54 = arith.addf %52, %53 : vector<16x32xf32>
    %55 = vector.shape_cast %54 : vector<16x32xf32> to vector<1x16x32xf32>
    %c0_24 = arith.constant 0 : index
    %c0_25 = arith.constant 0 : index
    %56 = vector.load %arg2[%c0_24, %c0_25] : memref<16x32xf32, #tpu.memory_space<vmem>>, vector<16x32xf32>
    %57 = vector.shape_cast %56 : vector<16x32xf32> to vector<1x16x32xf32>
    %58 = arith.addf %55, %57 : vector<1x16x32xf32>
    %c0_26 = arith.constant 0 : index
    %c0_27 = arith.constant 0 : index
    %c0_28 = arith.constant 0 : index
    %59 = vector.load %arg9[%c0_26, %c0_27, %c0_28] : memref<1x16x32xf32, #tpu.memory_space<vmem>>, vector<1x16x32xf32>
    tpu.vector_store %arg9[%c0_26, %c0_27, %c0_28], %58 {strides = array<i32>} : memref<1x16x32xf32, #tpu.memory_space<vmem>>, vector<1x16x32xf32>,
    return
  }
  func.func @transform_0(%arg0: i32) -> (i32, i32, i32) {
    %c0_i32 = arith.constant 0 : i32
    %c0_i32_0 = arith.constant 0 : i32
    %c0_i32_1 = arith.constant 0 : i32
    return %arg0, %c0_i32, %c0_i32_0 : i32, i32, i32
  }
  func.func @transform_1(%arg0: i32) -> (i32, i32) {
    %c0_i32 = arith.constant 0 : i32
    %c0_i32_0 = arith.constant 0 : i32
    %c0_i32_1 = arith.constant 0 : i32
    return %c0_i32, %c0_i32_0 : i32, i32
  }
  func.func @transform_2(%arg0: i32) -> (i32, i32) {
    %c0_i32 = arith.constant 0 : i32
    %c0_i32_0 = arith.constant 0 : i32
    %c0_i32_1 = arith.constant 0 : i32
    return %c0_i32, %c0_i32_0 : i32, i32
  }
  func.func @transform_3(%arg0: i32) -> (i32, i32) {
    %c0_i32 = arith.constant 0 : i32
    %c0_i32_0 = arith.constant 0 : i32
    %c0_i32_1 = arith.constant 0 : i32
    return %c0_i32, %c0_i32_0 : i32, i32
  }
  func.func @transform_4(%arg0: i32) -> (i32, i32) {
    %c0_i32 = arith.constant 0 : i32
    %c0_i32_0 = arith.constant 0 : i32
    %c0_i32_1 = arith.constant 0 : i32
    return %c0_i32, %c0_i32_0 : i32, i32
  }
  func.func @transform_5(%arg0: i32) -> (i32, i32) {
    %c0_i32 = arith.constant 0 : i32
    %c0_i32_0 = arith.constant 0 : i32
    %c0_i32_1 = arith.constant 0 : i32
    return %c0_i32, %c0_i32_0 : i32, i32
  }
  func.func @transform_6(%arg0: i32) -> (i32, i32) {
    %c0_i32 = arith.constant 0 : i32
    %c0_i32_0 = arith.constant 0 : i32
    %c0_i32_1 = arith.constant 0 : i32
    return %c0_i32, %c0_i32_0 : i32, i32
  }
  func.func @transform_7(%arg0: i32) -> (i32, i32) {
    %c0_i32 = arith.constant 0 : i32
    %c0_i32_0 = arith.constant 0 : i32
    %c0_i32_1 = arith.constant 0 : i32
    return %c0_i32, %c0_i32_0 : i32, i32
  }
  func.func @transform_8(%arg0: i32) -> (i32, i32, i32) {
    %c0_i32 = arith.constant 0 : i32
    %c0_i32_0 = arith.constant 0 : i32
    %c0_i32_1 = arith.constant 0 : i32
    return %arg0, %c0_i32, %c0_i32_0 : i32, i32, i32
  }
}

</mosaic_0001>

<llo_original>
// kernel: tpu_custom_call.1
$region0: #{tpu_custom_call.1}
  #allocation0 [shape = 'u32[]', space=smem, size = 0x4, offset = 0x4, fixed_abs, tag = 'smem constant byte address 0x4 - core index']
  #allocation1 [shape = 'u32[144,128]{1,0:T(1,128)}', space=vmem, size = 0x12000, scoped, tag = 'internal scratch']
  %s0 = inlined_call_operand.vmem [shape: f32[2,16,64], index: 0, kind: input, shape index: {}]
  %s1 = inlined_call_operand.vmem [shape: f32[16,32], index: 1, kind: input, shape index: {}]
  %s2 = inlined_call_operand.vmem [shape: f32[1,64], index: 2, kind: input, shape index: {}]
  %s3 = inlined_call_operand.vmem [shape: f32[1,64], index: 3, kind: input, shape index: {}]
  %s4 = inlined_call_operand.vmem [shape: f32[64,32], index: 4, kind: input, shape index: {}]
  %s5 = inlined_call_operand.vmem [shape: f32[1,32], index: 5, kind: input, shape index: {}]
  %s6 = inlined_call_operand.vmem [shape: f32[1,32], index: 6, kind: input, shape index: {}]
  %s7 = inlined_call_operand.vmem [shape: f32[1,32], index: 7, kind: input, shape index: {}]
  %s8 = inlined_call_operand.hbm [shape: f32[2,16,32], index: 8, kind: output, shape index: {}]
  %s9 = sld [smem:[#allocation0]]
  $region65: #{tpu_custom_call.1} parent=0
    _
  %s11 = ssub.s32 1, %s9
  %s12 = scalar_select 0, %s11, %s9
  $region1: #{tpu_custom_call.1} parent=0
    #allocation2 [shape = 'u8[16384]{0}', space=vmem, size = 0x4000, scoped, tag = 'output window, operand 0']
    #allocation3 [shape = 's32[2]{0}', space=sflag, size = 0x8, scoped, tag = 'scoped memory for tpu_custom_call.1']
    %13 = vsyncpa [#allocation3], 0
    %s14 = scalar_lea.sflag [#allocation3], 1
    %15 = vsyncpa %s14, 0
    loop: start=0, step=1, limit=4
    $region2: #{tpu_custom_call.1} parent=1 // loop_pre_header
      _
    $region3: #{tpu_custom_call.1} parent=1 // loop_header
      %s17 = sphi 0, %s21
      %p18 = scmp.ge.s32.totalorder %s17, 4
      %s27 = sphi 0, %s29
      %s30 = sphi 0, %s27
      %s31 = sphi 0, %s30
      %s47 = sphi 0, %s31
      %s51 = sphi 0, %s51
      %s53 = sphi 0, %s51
      %s54 = sphi 0, %s53
      %s68 = sphi 0, %s54
      %s72 = sphi 0, %s72
      %s74 = sphi 0, %s72
      %s75 = sphi 0, %s74
      %s89 = sphi 0, %s75
      %s93 = sphi 0, %s93
      %s95 = sphi 0, %s93
      %s96 = sphi 0, %s95
      %s110 = sphi 0, %s96
      %s114 = sphi 0, %s114
      %s116 = sphi 0, %s114
      %s117 = sphi 0, %s116
      %s131 = sphi 0, %s117
      %s135 = sphi 0, %s135
      %s137 = sphi 0, %s135
      %s138 = sphi 0, %s137
      %s152 = sphi 0, %s138
      %s156 = sphi 0, %s156
      %s158 = sphi 0, %s156
      %s159 = sphi 0, %s158
      %s173 = sphi 0, %s159
      %s177 = sphi 0, %s177
      %s179 = sphi 0, %s177
      %s180 = sphi 0, %s179
      %s194 = sphi 0, %s180
      %s200 = sphi 0, %s202
      %s203 = sphi 0, %s200
      %s204 = sphi 0, %s203
      %s220 = sphi 0, %s204
    $region4: #{tpu_custom_call.1} parent=1 // loop_header_branch
      %20 = sbr.rel (%p18) target = $region8
    $region5: #{tpu_custom_call.1} parent=1 // loop_body
      %s22 = ssub.s32 %s17, 1
      %s23 = ssub.s32 %s17, 2
      %s24 = sadd.s32 %s17, 1
      %s25 = ssub.s32 %s17, %s24
      %p26 = scmp.eq.s32.totalorder %s25, 0
      %s28 = sadd.s32 %s27, 1
      %s29 = scalar_select %p26, %s27, %s28
      %p32 = pneg %p26
      %p33 = scmp.eq.s32.totalorder %s17, 1
      %p34 = por %p32, %p33
      %p35 = scmp.ne.s32.totalorder %s27, %s30
      %p36 = scmp.eq.s32.totalorder %s17, 0
      %p37 = por %p35, %p36
      %p38 = scmp.ne.s32.totalorder %s27, %s30
      %p39 = scmp.eq.s32.totalorder %s22, 1
      %p40 = por %p38, %p39
      %p41 = scmp.ne.s32.totalorder %s30, %s31
      %p42 = scmp.eq.s32.totalorder %s22, 0
      %p43 = por %p41, %p42
      %p44 = scmp.ne.s32.totalorder %s30, %s31
      %p45 = scmp.eq.s32.totalorder %s23, 1
      %p46 = por %p44, %p45
      %p48 = scmp.ne.s32.totalorder %s31, %s47
      %p49 = scmp.eq.s32.totalorder %s23, 0
      %p50 = por %p48, %p49
      %s52 = sadd.s32 %s51, 1
      %p55 = scmp.eq.s32.totalorder %s17, 1
      %p56 = scmp.ne.s32.totalorder %s51, %s53
      %p57 = scmp.eq.s32.totalorder %s17, 0
      %p58 = por %p56, %p57
      %p59 = scmp.ne.s32.totalorder %s51, %s53
      %p60 = scmp.eq.s32.totalorder %s22, 1
      %p61 = por %p59, %p60
      %p62 = scmp.ne.s32.totalorder %s53, %s54
      %p63 = scmp.eq.s32.totalorder %s22, 0
      %p64 = por %p62, %p63
      %p65 = scmp.ne.s32.totalorder %s53, %s54
      %p66 = scmp.eq.s32.totalorder %s23, 1
      %p67 = por %p65, %p66
      %p69 = scmp.ne.s32.totalorder %s54, %s68
      %p70 = scmp.eq.s32.totalorder %s23, 0
      %p71 = por %p69, %p70
      %s73 = sadd.s32 %s72, 1
      %p76 = scmp.eq.s32.totalorder %s17, 1
      %p77 = scmp.ne.s32.totalorder %s72, %s74
      %p78 = scmp.eq.s32.totalorder %s17, 0
      %p79 = por %p77, %p78
      %p80 = scmp.ne.s32.totalorder %s72, %s74
      %p81 = scmp.eq.s32.totalorder %s22, 1
      %p82 = por %p80, %p81
      %p83 = scmp.ne.s32.totalorder %s74, %s75
      %p84 = scmp.eq.s32.totalorder %s22, 0
      %p85 = por %p83, %p84
      %p86 = scmp.ne.s32.totalorder %s74, %s75
      %p87 = scmp.eq.s32.totalorder %s23, 1
      %p88 = por %p86, %p87
      %p90 = scmp.ne.s32.totalorder %s75, %s89
      %p91 = scmp.eq.s32.totalorder %s23, 0
      %p92 = por %p90, %p91
      %s94 = sadd.s32 %s93, 1
      %p97 = scmp.eq.s32.totalorder %s17, 1
      %p98 = scmp.ne.s32.totalorder %s93, %s95
      %p99 = scmp.eq.s32.totalorder %s17, 0
      %p100 = por %p98, %p99
      %p101 = scmp.ne.s32.totalorder %s93, %s95
      %p102 = scmp.eq.s32.totalorder %s22, 1
      %p103 = por %p101, %p102
      %p104 = scmp.ne.s32.totalorder %s95, %s96
      %p105 = scmp.eq.s32.totalorder %s22, 0
      %p106 = por %p104, %p105
      %p107 = scmp.ne.s32.totalorder %s95, %s96
      %p108 = scmp.eq.s32.totalorder %s23, 1
      %p109 = por %p107, %p108
      %p111 = scmp.ne.s32.totalorder %s96, %s110
      %p112 = scmp.eq.s32.totalorder %s23, 0
      %p113 = por %p111, %p112
      %s115 = sadd.s32 %s114, 1
      %p118 = scmp.eq.s32.totalorder %s17, 1
      %p119 = scmp.ne.s32.totalorder %s114, %s116
      %p120 = scmp.eq.s32.totalorder %s17, 0
      %p121 = por %p119, %p120
      %p122 = scmp.ne.s32.totalorder %s114, %s116
      %p123 = scmp.eq.s32.totalorder %s22, 1
      %p124 = por %p122, %p123
      %p125 = scmp.ne.s32.totalorder %s116, %s117
      %p126 = scmp.eq.s32.totalorder %s22, 0
      %p127 = por %p125, %p126
      %p128 = scmp.ne.s32.totalorder %s116, %s117
      %p129 = scmp.eq.s32.totalorder %s23, 1
      %p130 = por %p128, %p129
      %p132 = scmp.ne.s32.totalorder %s117, %s131
      %p133 = scmp.eq.s32.totalorder %s23, 0
      %p134 = por %p132, %p133
      %s136 = sadd.s32 %s135, 1
      %p139 = scmp.eq.s32.totalorder %s17, 1
      %p140 = scmp.ne.s32.totalorder %s135, %s137
      %p141 = scmp.eq.s32.totalorder %s17, 0
      %p142 = por %p140, %p141
      %p143 = scmp.ne.s32.totalorder %s135, %s137
      %p144 = scmp.eq.s32.totalorder %s22, 1
      %p145 = por %p143, %p144
      %p146 = scmp.ne.s32.totalorder %s137, %s138
      %p147 = scmp.eq.s32.totalorder %s22, 0
      %p148 = por %p146, %p147
      %p149 = scmp.ne.s32.totalorder %s137, %s138
      %p150 = scmp.eq.s32.totalorder %s23, 1
      %p151 = por %p149, %p150
      %p153 = scmp.ne.s32.totalorder %s138, %s152
      %p154 = scmp.eq.s32.totalorder %s23, 0
      %p155 = por %p153, %p154
      %s157 = sadd.s32 %s156, 1
      %p160 = scmp.eq.s32.totalorder %s17, 1
      %p161 = scmp.ne.s32.totalorder %s156, %s158
      %p162 = scmp.eq.s32.totalorder %s17, 0
      %p163 = por %p161, %p162
      %p164 = scmp.ne.s32.totalorder %s156, %s158
      %p165 = scmp.eq.s32.totalorder %s22, 1
      %p166 = por %p164, %p165
      %p167 = scmp.ne.s32.totalorder %s158, %s159
      %p168 = scmp.eq.s32.totalorder %s22, 0
      %p169 = por %p167, %p168
      %p170 = scmp.ne.s32.totalorder %s158, %s159
      %p171 = scmp.eq.s32.totalorder %s23, 1
      %p172 = por %p170, %p171
      %p174 = scmp.ne.s32.totalorder %s159, %s173
      %p175 = scmp.eq.s32.totalorder %s23, 0
      %p176 = por %p174, %p175
      %s178 = sadd.s32 %s177, 1
      %p181 = scmp.eq.s32.totalorder %s17, 1
      %p182 = scmp.ne.s32.totalorder %s177, %s179
      %p183 = scmp.eq.s32.totalorder %s17, 0
      %p184 = por %p182, %p183
      %p185 = scmp.ne.s32.totalorder %s177, %s179
      %p186 = scmp.eq.s32.totalorder %s22, 1
      %p187 = por %p185, %p186
      %p188 = scmp.ne.s32.totalorder %s179, %s180
      %p189 = scmp.eq.s32.totalorder %s22, 0
      %p190 = por %p188, %p189
      %p191 = scmp.ne.s32.totalorder %s179, %s180
      %p192 = scmp.eq.s32.totalorder %s23, 1
      %p193 = por %p191, %p192
      %p195 = scmp.ne.s32.totalorder %s180, %s194
      %p196 = scmp.eq.s32.totalorder %s23, 0
      %p197 = por %p195, %p196
      %s198 = ssub.s32 %s17, %s24
      %p199 = scmp.eq.s32.totalorder %s198, 0
      %s201 = sadd.s32 %s200, 1
      %s202 = scalar_select %p199, %s200, %s201
      %p205 = pneg %p199
      %p206 = scmp.eq.s32.totalorder %s17, 1
      %p207 = por %p205, %p206
      %p208 = scmp.ne.s32.totalorder %s200, %s203
      %p209 = scmp.eq.s32.totalorder %s17, 0
      %p210 = por %p208, %p209
      %p211 = scmp.ne.s32.totalorder %s200, %s203
      %p212 = scmp.eq.s32.totalorder %s22, 1
      %p213 = por %p211, %p212
      %p214 = scmp.ne.s32.totalorder %s203, %s204
      %p215 = scmp.eq.s32.totalorder %s22, 0
      %p216 = por %p214, %p215
      %p217 = scmp.ne.s32.totalorder %s203, %s204
      %p218 = scmp.eq.s32.totalorder %s23, 1
      %p219 = por %p217, %p218
      %p221 = scmp.ne.s32.totalorder %s204, %s220
      %p222 = scmp.eq.s32.totalorder %s23, 0
      %p223 = por %p221, %p222
      %p224 = scmp.le.s32.totalorder 1, %s17
      %p225 = scmp.lt.s32.totalorder %s17, 3
      %p226 = pnand %p224, %p225
      %p227 = pneg %p226
      // Predicated region
      $region9: #{tpu_custom_call.1} parent=5 // pred_check
        _
      $region10: #{tpu_custom_call.1} parent=5 // pred_check_branch
        %229 = sbr.rel (%p226) target = $region12
      $region11: #{tpu_custom_call.1} parent=5 // pred_region
        %s230 = ssub.s32 %s17, 1
        // Predicated region
        $region13: #{tpu_custom_call.1} parent=11 // pred_check
          %p231 = pneg %p64
        $region14: #{tpu_custom_call.1} parent=11 // pred_check_branch
          %233 = sbr.rel (%p231) target = $region16
        $region15: #{tpu_custom_call.1} parent=11 // pred_region
          _
        $region16: #{tpu_custom_call.1} parent=11 // pred_fallthru
          _
        // Predicated region
        $region17: #{tpu_custom_call.1} parent=11 // pred_check
          %p234 = pneg %p85
        $region18: #{tpu_custom_call.1} parent=11 // pred_check_branch
          %236 = sbr.rel (%p234) target = $region20
        $region19: #{tpu_custom_call.1} parent=11 // pred_region
          _
        $region20: #{tpu_custom_call.1} parent=11 // pred_fallthru
          _
        // Predicated region
        $region21: #{tpu_custom_call.1} parent=11 // pred_check
          %p237 = pneg %p106
        $region22: #{tpu_custom_call.1} parent=11 // pred_check_branch
          %239 = sbr.rel (%p237) target = $region24
        $region23: #{tpu_custom_call.1} parent=11 // pred_region
          _
        $region24: #{tpu_custom_call.1} parent=11 // pred_fallthru
          _
        // Predicated region
        $region25: #{tpu_custom_call.1} parent=11 // pred_check
          %p240 = pneg %p127
        $region26: #{tpu_custom_call.1} parent=11 // pred_check_branch
          %242 = sbr.rel (%p240) target = $region28
        $region27: #{tpu_custom_call.1} parent=11 // pred_region
          _
        $region28: #{tpu_custom_call.1} parent=11 // pred_fallthru
          _
        // Predicated region
        $region29: #{tpu_custom_call.1} parent=11 // pred_check
          %p243 = pneg %p148
        $region30: #{tpu_custom_call.1} parent=11 // pred_check_branch
          %245 = sbr.rel (%p243) target = $region32
        $region31: #{tpu_custom_call.1} parent=11 // pred_region
          _
        $region32: #{tpu_custom_call.1} parent=11 // pred_fallthru
          _
        // Predicated region
        $region33: #{tpu_custom_call.1} parent=11 // pred_check
          %p246 = pneg %p169
        $region34: #{tpu_custom_call.1} parent=11 // pred_check_branch
          %248 = sbr.rel (%p246) target = $region36
        $region35: #{tpu_custom_call.1} parent=11 // pred_region
          _
        $region36: #{tpu_custom_call.1} parent=11 // pred_fallthru
          _
        // Predicated region
        $region37: #{tpu_custom_call.1} parent=11 // pred_check
          %p249 = pneg %p190
        $region38: #{tpu_custom_call.1} parent=11 // pred_check_branch
          %251 = sbr.rel (%p249) target = $region40
        $region39: #{tpu_custom_call.1} parent=11 // pred_region
          _
        $region40: #{tpu_custom_call.1} parent=11 // pred_fallthru
          _
      $region12: #{tpu_custom_call.1} parent=5 // pred_fallthru
        _
      %p252 = scmp.lt.s32.totalorder %s17, 2
      // Predicated region
      $region41: #{tpu_custom_call.1} parent=5 // pred_check
        %p253 = pneg %p252
      $region42: #{tpu_custom_call.1} parent=5 // pred_check_branch
        %255 = sbr.rel (%p253) target = $region44
      $region43: #{tpu_custom_call.1} parent=5 // pred_region
        // Predicated region
        $region45: #{tpu_custom_call.1} parent=43 // pred_check
          %p256 = pneg %p37
        $region46: #{tpu_custom_call.1} parent=43 // pred_check_branch
          %258 = sbr.rel (%p256) target = $region48
        $region47: #{tpu_custom_call.1} parent=43 // pred_region
          %p259 = scmp.lt.s32.totalorder %s17, 1
          %s260 = scalar_select %p259, %s17, 1
          %s261 = smul.addr %s260, 2
          %s262 = smul.addr %s261, 8
          %s263 = scalar_lea.vmem %s0, %s262
        $region48: #{tpu_custom_call.1} parent=43 // pred_fallthru
          _
      $region44: #{tpu_custom_call.1} parent=5 // pred_fallthru
        _
      %p264 = scmp.le.s32.totalorder 1, %s17
      %p265 = scmp.lt.s32.totalorder %s17, 3
      %p266 = pnand %p264, %p265
      %p267 = pneg %p266
      // Predicated region
      $region49: #{tpu_custom_call.1} parent=5 // pred_check
        _
      $region50: #{tpu_custom_call.1} parent=5 // pred_check_branch
        %269 = sbr.rel (%p266) target = $region52
      $region51: #{tpu_custom_call.1} parent=5 // pred_region
        %s270 = ssub.s32 %s17, 1
        %p271 = scmp.lt.s32.totalorder %s22, 1
        %s272 = scalar_select %p271, %s22, 1
        %s273 = smul.addr %s272, 2
        %s274 = smul.addr %s273, 8
        %s275 = scalar_lea.vmem %s0, %s274
        %p276 = pneg %p43
        %p277 = pneg %p40
        %p278 = pneg %p64
        %p279 = pneg %p61
        %p280 = pneg %p85
        %p281 = pneg %p82
        %p282 = pneg %p106
        %p283 = pneg %p103
        %p284 = pneg %p127
        %p285 = pneg %p124
        %p286 = pneg %p148
        %p287 = pneg %p145
        %p288 = pneg %p169
        %p289 = pneg %p166
        %p290 = pneg %p190
        %p291 = pneg %p187
        %p292 = pneg %p216
        %p293 = pneg %p213
        %s294 = sand.u32 %s203, 1
        %s295 = scalar_lea.sflag [#allocation3], %s294
        %s296 = sand.u32 %s203, 1
        %s297 = smul.addr %s296, 16
        %s298 = scalar_lea.vmem [#allocation2], %s297
        %p299 = scmp.lt.s32.totalorder %s22, 1
        %s300 = scalar_select %p299, %s22, 1
        %s301 = smul.addr %s300, 2
        %s302 = smul.addr %s301, 8
        %s303 = scalar_lea.vmem %s0, %s302
        %v304 = vld [vmem:[%s303] sm:$0xff]
        %v305 = vld [vmem:[%s303 + $0x8] sm:$0xff]
        %v306 = vld [vmem:[%s2] sm:$0x1]
        %v307 = vld [vmem:[%s3] sm:$0x1]
        %vm308 = vcmask 523264
        %v309 = vsel %vm308, %v304, 0.0
        %310 = vadd.xlane.f32.xlu0 %v309
        %v311 = vpop.xlane.xlu0 %310
        %v312 = vsel %vm308, %v305, 0.0
        %313 = vadd.xlane.f32.xlu0 %v312
        %v314 = vpop.xlane.xlu0 %313
        %v315 = vrcp.pop 64.0
        %v316 = vmul.f32 %v311, %v315
        %v317 = vmul.f32 %v314, %v315
        %v318 = vsub.f32 %v304, %v316
        %v319 = vsub.f32 %v305, %v317
        %v320 = vmul.f32 %v318, %v318
        %v321 = vmul.f32 %v319, %v319
        %v322 = vsel %vm308, %v320, 0.0
        %323 = vadd.xlane.f32.xlu0 %v322
        %v324 = vpop.xlane.xlu0 %323
        %v325 = vsel %vm308, %v321, 0.0
        %326 = vadd.xlane.f32.xlu0 %v325
        %v327 = vpop.xlane.xlu0 %326
        %v328 = vmul.f32 %v324, %v315
        %v329 = vmul.f32 %v327, %v315
        %v330 = vadd.f32 %v328, 1e-05
        %v331 = vadd.f32 %v329, 1e-05
        %v332 = vrsqrt.pop %v330
        %v333 = vrsqrt.pop %v331
        %v334 = vmul.f32 %v318, %v332
        %v335 = vmul.f32 %v319, %v333
        %v337 = vlaneseq
        %v338 = vshrl.u32 %v337, 7
        %v339 = vsub.s32 0, %v338
        %v340 = vrot.slane %v306, %v339
        %v342 = vmul.f32 %v334, %v340
        %v343 = vmul.f32 %v335, %v340
        %v345 = vlaneseq
        %v346 = vshrl.u32 %v345, 7
        %v347 = vsub.s32 0, %v346
        %v348 = vrot.slane %v307, %v347
        %v350 = vadd.f32 %v342, %v348
        %v351 = vadd.f32 %v343, %v348
        %v352 = vld [vmem:[%s4] sm:$0xff]
        %v353 = vld [vmem:[%s4 + $0x8] sm:$0xff]
        %v354 = vld [vmem:[%s4 + $0x10] sm:$0xff]
        %v355 = vld [vmem:[%s4 + $0x18] sm:$0xff]
        %v356 = vld [vmem:[%s4 + $0x20] sm:$0xff]
        %v357 = vld [vmem:[%s4 + $0x28] sm:$0xff]
        %v358 = vld [vmem:[%s4 + $0x30] sm:$0xff]
        %v359 = vld [vmem:[%s4 + $0x38] sm:$0xff]
        %v360 = vld [vmem:[%s5] sm:$0x1]
        %v362 = vlaneseq
        %v363 = vshrl.u32 %v362, 7
        %v364 = vsub.s32 0, %v363
        %v365 = vrot.slane %v360, %v364
        %v368 = vsel %vm308, %v350, 0
        %v371 = vsel %vm308, %v351, 0
        %373 = vmatprep.subr.mxu0 0.0
        %374 = vmatpush1.msra.mxu0 %v352
        %375 = vmatprep.subr.mxu0 0.0
        %376 = vmatpush1.msra.mxu0 %v353
        %377 = vmatprep.subr.mxu0 0.0
        %378 = vmatpush1.msra.mxu0 %v354
        %379 = vmatprep.subr.mxu0 0.0
        %380 = vmatpush1.msra.mxu0 %v355
        %381 = vmatprep.subr.mxu0 0.0
        %382 = vmatpush1.msra.mxu0 %v356
        %383 = vmatprep.subr.mxu0 0.0
        %384 = vmatpush1.msra.mxu0 %v357
        %385 = vmatprep.subr.mxu0 0.0
        %386 = vmatpush1.msra.mxu0 %v358
        %387 = vmatprep.subr.mxu0 0.0
        %388 = vmatpush1.msra.mxu0 %v359
        %389 = vmatprep.subr.mxu0 0.0
        %390 = vmatpush1.msra.mxu0 0.0
        %391 = vmatprep.subr.mxu0 0.0
        %392 = vmatpush1.msra.mxu0 0.0
        %393 = vmatprep.subr.mxu0 0.0
        %394 = vmatpush1.msra.mxu0 0.0
        %395 = vmatprep.subr.mxu0 0.0
        %396 = vmatpush1.msra.mxu0 0.0
        %397 = vmatprep.subr.mxu0 0.0
        %398 = vmatpush1.msra.mxu0 0.0
        %399 = vmatprep.subr.mxu0 0.0
        %400 = vmatpush1.msra.mxu0 0.0
        %401 = vmatprep.subr.mxu0 0.0
        %402 = vmatpush1.msra.mxu0 0.0
        %403 = vmatprep.subr.mxu0 0.0
        %404 = vmatpush1.msra.mxu0 0.0
        %405 = vmatprep.subr.mxu0 0.0
        %406 = vmatpush1.msra.mxu0 0.0
        %407 = vmatprep.subr.mxu0 0.0
        %408 = vmatpush1.msra.mxu0 0.0
        %409 = vmatprep.subr.mxu0 0.0
        %410 = vmatpush1.msra.mxu0 0.0
        %411 = vmatprep.subr.mxu0 0.0
        %412 = vmatpush1.msra.mxu0 0.0
        %413 = vmatprep.subr.mxu0 0.0
        %414 = vmatpush1.msra.mxu0 0.0
        %415 = vmatprep.subr.mxu0 0.0
        %416 = vmatpush1.msra.mxu0 0.0
        %417 = vmatprep.subr.mxu0 0.0
        %418 = vmatpush1.msra.mxu0 0.0
        %419 = vmatprep.subr.mxu0 0.0
        %420 = vmatpush1.msra.mxu0 0.0
        %421 = vmatprep.subr.mxu0 0.0
        %422 = vmatpush1.msra.mxu0 0.0
        %423 = vmatprep.subr.mxu0 0.0
        %424 = vmatpush1.msra.mxu0 0.0
        %425 = vmatprep.subr.mxu0 0.0
        %426 = vmatpush1.msra.mxu0 0.0
        %427 = vmatprep.subr.mxu0 0.0
        %428 = vmatpush1.msra.mxu0 0.0
        %429 = vmatprep.subr.mxu0 0.0
        %430 = vmatpush1.msra.mxu0 0.0
        %431 = vmatprep.subr.mxu0 0.0
        %432 = vmatpush1.msra.mxu0 0.0
        %433 = vmatprep.subr.mxu0 0.0
        %434 = vmatpush1.msra.mxu0 0.0
        %435 = vmatprep.subr.mxu0 0.0
        %436 = vmatpush1.msra.mxu0 0.0
        %437 = vmatprep.mubr.f32.mxu0 0.0
        %438 = vmatmul.mubr.f32.gmra.mrb[0].mxu0 %v368
        %v439 = vpop.f32.mrb[0].mxu0
        %v440 = vadd.f32 %v365, %v439
        %v441 = vpop.f32.mrb[0].mxu0
        %442 = vmatprep.mubr.f32.mxu0 0.0
        %443 = vmatmul.mubr.f32.gmra.mrb[0].mxu0 %v371
        %v444 = vpop.f32.mrb[0].mxu0
        %v445 = vadd.f32 %v365, %v444
        %v446 = vpop.f32.mrb[0].mxu0
        %447 = vdwg.mxu0
        %v448 = vld [vmem:[%s6] sm:$0x1]
        %v449 = vld [vmem:[%s7] sm:$0x1]
        %vm450 = vcmask 261120
        %v451 = vsel %vm450, %v440, 0.0
        %452 = vadd.xlane.f32.xlu0 %v451
        %v453 = vpop.xlane.xlu0 %452
        %v454 = vsel %vm450, %v445, 0.0
        %455 = vadd.xlane.f32.xlu0 %v454
        %v456 = vpop.xlane.xlu0 %455
        %v457 = vrcp.pop 32.0
        %v458 = vmul.f32 %v453, %v457
        %v459 = vmul.f32 %v456, %v457
        %v460 = vsub.f32 %v440, %v458
        %v461 = vsub.f32 %v445, %v459
        %v462 = vmul.f32 %v460, %v460
        %v463 = vmul.f32 %v461, %v461
        %v464 = vsel %vm450, %v462, 0.0
        %465 = vadd.xlane.f32.xlu0 %v464
        %v466 = vpop.xlane.xlu0 %465
        %v467 = vsel %vm450, %v463, 0.0
        %468 = vadd.xlane.f32.xlu0 %v467
        %v469 = vpop.xlane.xlu0 %468
        %v470 = vmul.f32 %v466, %v457
        %v471 = vmul.f32 %v469, %v457
        %v472 = vadd.f32 %v470, 1e-05
        %v473 = vadd.f32 %v471, 1e-05
        %v474 = vrsqrt.pop %v472
        %v475 = vrsqrt.pop %v473
        %v476 = vmul.f32 %v460, %v474
        %v477 = vmul.f32 %v461, %v475
        %v479 = vlaneseq
        %v480 = vshrl.u32 %v479, 7
        %v481 = vsub.s32 0, %v480
        %v482 = vrot.slane %v448, %v481
        %v484 = vmul.f32 %v476, %v482
        %v485 = vmul.f32 %v477, %v482
        %v487 = vlaneseq
        %v488 = vshrl.u32 %v487, 7
        %v489 = vsub.s32 0, %v488
        %v490 = vrot.slane %v449, %v489
        %v492 = vadd.f32 %v484, %v490
        %v493 = vadd.f32 %v485, %v490
        %v494 = vld [vmem:[%s1] sm:$0xff]
        %v495 = vld [vmem:[%s1 + $0x8] sm:$0xff]
        %v496 = vadd.f32 %v492, %v494
        %v497 = vadd.f32 %v493, %v495
        %498 = vst.msk [vmem:[%s298] sm:$0xff] %vm450, %v496
        %499 = vst.msk [vmem:[%s298 + $0x8] sm:$0xff] %vm450, %v497
        %s500 = sand.u32 %s203, 1
        %s501 = scalar_lea.sflag [#allocation3], %s500
        %s502 = sand.u32 %s203, 1
        %s503 = smul.addr %s502, 16
        %s504 = scalar_lea.vmem [#allocation2], %s503
        // Predicated region
        $region53: #{tpu_custom_call.1} parent=51 // pred_check
          %p505 = pneg %p213
        $region54: #{tpu_custom_call.1} parent=51 // pred_check_branch
          %507 = sbr.rel (%p505) target = $region56
        $region55: #{tpu_custom_call.1} parent=51 // pred_region
          %s509 = ssub.s32 256, 256
          %510 = vsyncadd %s501, %s509
          %s511 = smul.addr %s22, 2
          %s512 = smul.addr %s511, 128
          %s513 = scalar_lea.hbm %s8, %s512
          %s514 = sshll.u32 %s504, 4
          %s515 = int_to_ptr.vmem [resolvable:$true] %s514
          %520 = dma.vmem_to_hbm [thread:$0]  %s515, 256, %s513, %s501, 128, 128, 8
        $region56: #{tpu_custom_call.1} parent=51 // pred_fallthru
          _
      $region52: #{tpu_custom_call.1} parent=5 // pred_fallthru
        _
      %p521 = scmp.le.s32.totalorder 2, %s17
      // Predicated region
      $region57: #{tpu_custom_call.1} parent=5 // pred_check
        %p522 = pneg %p521
      $region58: #{tpu_custom_call.1} parent=5 // pred_check_branch
        %524 = sbr.rel (%p522) target = $region60
      $region59: #{tpu_custom_call.1} parent=5 // pred_region
        %s525 = ssub.s32 %s17, 2
        // Predicated region
        $region61: #{tpu_custom_call.1} parent=59 // pred_check
          %p526 = pneg %p219
        $region62: #{tpu_custom_call.1} parent=59 // pred_check_branch
          %528 = sbr.rel (%p526) target = $region64
        $region63: #{tpu_custom_call.1} parent=59 // pred_region
          %s529 = sand.u32 %s204, 1
          %s530 = scalar_lea.sflag [#allocation3], %s529
          %s531 = sand.u32 %s204, 1
          %s532 = smul.addr %s531, 16
          %s533 = scalar_lea.vmem [#allocation2], %s532
          %534 = dma.done %s530, 256
        $region64: #{tpu_custom_call.1} parent=59 // pred_fallthru
          _
      $region60: #{tpu_custom_call.1} parent=5 // pred_fallthru
        _
    $region6: #{tpu_custom_call.1} parent=1 // loop_footer
      %s21 = sadd.s32 1, %s17
    $region7: #{tpu_custom_call.1} parent=1 // loop_footer_branch
      %16 = sbr.rel target = $region3
    $region8: #{tpu_custom_call.1} parent=1 // loop_exit
      _
    %535 = vsyncpa [#allocation3], 1
    %s536 = scalar_lea.sflag [#allocation3], 1
    %537 = vsyncpa %s536, 1

</llo_original>
